<compile_context>
chip_gen: v7x
topology: tpu7x:2x2x1
jax: 0.10.0
libtpu: 0.0.40
codegen_flags: <defaults>
</compile_context>

<pallas_src>
import jax
import jax.numpy as jnp
from jax import lax
from jax.experimental import pallas as pl
from jax.experimental.pallas import tpu as pltpu


# Deterministic "module init": loss_config_list with weights (no checkpoint).
LOSS_CONFIG = [
    {"MSELoss": {"weight": 1.0}},   # sub-loss 0: mean((x - y)^2)
    {"L1Loss":  {"weight": 0.5}},   # sub-loss 1: mean(|x - y|)
]
LOSS_WEIGHTS = [list(c.values())[0]["weight"] for c in LOSS_CONFIG]
LOSS_NAMES = [list(c.keys())[0] for c in LOSS_CONFIG]

LANES = 128
SUBLANES = 8

# Compute the bf16 difference in bf16 and upcast once (saves one VPU cast per
# element where a bf16 VPU exists; harmless on v5e where the compiler upcasts
# anyway).  Minor precision delta vs upcast-first; set False for bit-exactness.
SUBTRACT_IN_NATIVE_DTYPE = True

VMEM_LIMIT_BYTES = 48 * 1024 * 1024   # > v5e's 16 MiB scoped default, < v7x's 64 MiB physical


def _cdiv(a, b):
    return -(-a // b)


def _round_up(x, m):
    return _cdiv(x, m) * m


def _num_tensorcores():
    """Shards for the leading grid axis: 2 on dual-TensorCore v7x, else 1.

    On single-TC v5e/v6e a shard axis would only add grid steps, so we drop it.
    (Keyed off device_kind; pltpu.get_tpu_info field names for core count are
    not stable enough to rely on.)
    """
    try:
        kind = jax.devices()[0].device_kind.lower()
    except Exception:
        return 1
    if "v7" in kind or "tpu7" in kind:
        return 2
    return 1


def _make_kernel(tile_r, tiles_per_shard, rows, needs_mask, native_diff):
    """Build the per-tile partial-reduction kernel for a static tiling plan."""

    def kernel(pred_ref, tgt_ref, sq_ref, abs_ref):
        # pred_ref, tgt_ref : VMEM (tile_r, 128) tiles in the native dtype.
        # sq_ref, abs_ref   : VMEM (8, 128) f32 accumulators, one output block
        #                     per shard, resident across the reduction axis.
        t = pl.program_id(1)

        @pl.when(t == 0)
        def _init():
            sq_ref[...] = jnp.zeros_like(sq_ref)
            abs_ref[...] = jnp.zeros_like(abs_ref)

        if native_diff:
            # bf16/fp16 subtraction, single upcast to f32 afterwards.
            diff = (pred_ref[...] - tgt_ref[...]).astype(jnp.float32)
        else:
            diff = pred_ref[...].astype(jnp.float32) - tgt_ref[...].astype(jnp.float32)

        def accumulate(d):
            # Fold (tile_r, 128) -> (8, 128) with pure vreg adds (VPU only);
            # the single cross-lane collapse happens once, in the JAX wrapper.
            sq = d * d
            ab = jnp.abs(d)
            sq_ref[...] += sq.reshape(-1, SUBLANES, LANES).sum(axis=0)
            abs_ref[...] += ab.reshape(-1, SUBLANES, LANES).sum(axis=0)

        if needs_mask:
            # Only emitted when the static plan has a partial/overhang tile.
            s = pl.program_id(0)
            valid = rows - (s * tiles_per_shard + t) * tile_r

            @pl.when(valid >= tile_r)
            def _full_tile():
                accumulate(diff)

            @pl.when(valid < tile_r)
            def _partial_tile():
                # Out-of-range rows of a partial block hold unspecified data:
                # zero them so they contribute nothing to either sum.
                row_ids = lax.broadcasted_iota(jnp.int32, diff.shape, 0)
                accumulate(jnp.where(row_ids < valid, diff, 0.0))
        else:
            accumulate(diff)

    return kernel


def combined_loss(pred, target):
    """Pallas-backed CombinedLoss.forward for the fixed LOSS_CONFIG.

    pred, target: arrays of identical shape (NCHW in the PyTorch convention).
    Returns a dict mirroring the PyTorch forward's loss_dict.
    """
    assert pred.shape == target.shape, "input/target shape mismatch"
    total = pred.size
    assert total > 0

    itemsize = jnp.dtype(pred.dtype).itemsize
    tile_r_max = 8192 if itemsize <= 2 else 4096   # ~4 MiB per input per grid step
    num_shards = max(1, _num_tensorcores())

    # ---- flatten to a lane-dense slab in the NATIVE dtype -------------------
    # reshape of a contiguous tensor is free; pad ONLY if the element count is
    # not a multiple of 8*128 (rare), never to the full shard*tile granularity.
    granule = SUBLANES * LANES
    padded_total = _round_up(total, granule)
    p_flat = pred.reshape(-1)
    t_flat = target.reshape(-1)
    if padded_total != total:
        # TODO(synk): the rare non-1024-multiple case still costs one pad copy;
        # zero padding is exact (diff == 0) and the mean divides by the true N.
        pad = padded_total - total
        p_flat = jnp.pad(p_flat, (0, pad))
        t_flat = jnp.pad(t_flat, (0, pad))
    rows = padded_total // LANES            # multiple of 8
    p2 = p_flat.reshape(rows, LANES)
    t2 = t_flat.reshape(rows, LANES)

    # ---- static tiling plan --------------------------------------------------
    tile_r = min(tile_r_max, rows)          # multiple of 8, never exceeds array
    num_tiles = _cdiv(rows, tile_r)
    tiles_per_shard = _cdiv(num_tiles, num_shards)
    needs_mask = (num_shards * tiles_per_shard * tile_r != rows)

    native_diff = (SUBTRACT_IN_NATIVE_DTYPE and itemsize < 4
                   and jnp.issubdtype(p2.dtype, jnp.floating))

    kernel = _make_kernel(tile_r, tiles_per_shard, rows, needs_mask, native_diff)

    last_tile = num_tiles - 1

    def in_map(s, t):
        # Clamp so overhang grid steps (shard imbalance) never DMA out of
        # bounds; their contribution is zeroed by the in-kernel mask.
        return (jnp.minimum(s * tiles_per_shard + t, last_tile), 0)

    def out_map(s, t):
        return (s, 0, 0)

    cost = pl.CostEstimate(
        flops=6 * padded_total,
        transcendentals=0,
        bytes_accessed=2 * padded_total * itemsize
                       + 2 * num_shards * SUBLANES * LANES * 4,
    )

    def run(dim_sem):
        return pl.pallas_call(
            kernel,
            grid=(num_shards, tiles_per_shard),
            in_specs=[
                pl.BlockSpec((tile_r, LANES), in_map),   # pred tile
                pl.BlockSpec((tile_r, LANES), in_map),   # target tile
            ],
            out_specs=[
                pl.BlockSpec((None, SUBLANES, LANES), out_map),  # sum(diff^2) partials
                pl.BlockSpec((None, SUBLANES, LANES), out_map),  # sum(|diff|) partials
            ],
            out_shape=[
                jax.ShapeDtypeStruct((num_shards, SUBLANES, LANES), jnp.float32),
                jax.ShapeDtypeStruct((num_shards, SUBLANES, LANES), jnp.float32),
            ],
            compiler_params=pltpu.CompilerParams(
                dimension_semantics=dim_sem,
                vmem_limit_bytes=VMEM_LIMIT_BYTES),
            cost_estimate=cost,
        )(p2, t2)

    if num_shards > 1:
        # Genuine dual-TensorCore sharding on v7x: each core owns one shard's
        # row range and its own (8,128) accumulator blocks.
        try:
            out_sq, out_abs = run((pltpu.CORE_PARALLEL, pltpu.ARBITRARY))
        except Exception:
            # Fallback: classic megacore "parallel" hint if CORE_PARALLEL is
            # rejected by this jax/libtpu combination.
            out_sq, out_abs = run((pltpu.PARALLEL, pltpu.ARBITRARY))
    else:
        out_sq, out_abs = run((pltpu.ARBITRARY, pltpu.ARBITRARY))

    # ---- tiny finalize in JAX: collapse partials, divide by TRUE N, weight --
    n = jnp.float32(total)
    mse = jnp.sum(out_sq) / n
    mae = jnp.sum(out_abs) / n
    w_mse = mse * jnp.float32(LOSS_WEIGHTS[0])
    w_mae = mae * jnp.float32(LOSS_WEIGHTS[1])

    # TODO(synk): PyTorch keys plain tensor sub-losses as 'loss_{str(tensor)}_{idx}';
    # we use the sub-loss class name instead of str(tensor).
    loss_dict = {
        f"loss_{LOSS_NAMES[0]}_0": w_mse,
        f"loss_{LOSS_NAMES[1]}_1": w_mae,
        "loss": w_mse + w_mae,
    }
    return loss_dict


if __name__ == "__main__":
    key = jax.random.PRNGKey(0)
    k1, k2 = jax.random.split(key)
    # NCHW, matching the PyTorch convention.
    B, C, H, W = 2, 4, 16, 16
    x = jax.random.normal(k1, (B, C, H, W), dtype=jnp.float32)      # input
    batch = jax.random.normal(k2, (B, C, H, W), dtype=jnp.float32)  # target

    result = combined_loss(x, batch)
    jax.block_until_ready(result["loss"])

    # Pure-JAX reference for sanity.
    d = x.astype(jnp.float32) - batch.astype(jnp.float32)
    ref_mse = jnp.mean(d * d) * LOSS_WEIGHTS[0]
    ref_mae = jnp.mean(jnp.abs(d)) * LOSS_WEIGHTS[1]
    ref_total = ref_mse + ref_mae
    assert jnp.allclose(result[f"loss_{LOSS_NAMES[0]}_0"], ref_mse, rtol=1e-5, atol=1e-6)
    assert jnp.allclose(result[f"loss_{LOSS_NAMES[1]}_1"], ref_mae, rtol=1e-5, atol=1e-6)
    assert jnp.allclose(result["loss"], ref_total, rtol=1e-5, atol=1e-6)

    print("KERNEL_OK")
</pallas_src>

<mosaic_0001>
module attributes {stable_mosaic.version = 11 : i64} {
  func.func @kernel(%arg0: i32, %arg1: i32, %arg2: memref<16x128xf32, #tpu.memory_space<vmem>>, %arg3: memref<16x128xf32, #tpu.memory_space<vmem>>, %arg4: memref<1x8x128xf32, #tpu.memory_space<vmem>>, %arg5: memref<1x8x128xf32, #tpu.memory_space<vmem>>) attributes {dimension_semantics = [#tpu.dimension_semantics<arbitrary>, #tpu.dimension_semantics<arbitrary>], iteration_bounds = array<i64: 1, 1>, scalar_prefetch = 0 : i64, scratch_operands = 0 : i64, tpu.core_type = #tpu.core_type<tc>, window_params = [{transform_indices = @transform_0, window_bounds = array<i64: 16, 128>}, {transform_indices = @transform_1, window_bounds = array<i64: 16, 128>}, {transform_indices = @transform_2, window_bounds = array<i64: 1, 8, 128>}, {transform_indices = @transform_3, window_bounds = array<i64: 1, 8, 128>}]} {
    %c0_i32 = arith.constant 0 : i32
    %0 = arith.cmpi eq, %arg1, %c0_i32 : i32
    %1 = arith.extui %0 : i1 to i32
    %c0_i32_0 = arith.constant 0 : i32
    %2 = arith.cmpi ne, %1, %c0_i32_0 : i32
    scf.if %2 {
      %cst_17 = arith.constant 0.000000e+00 : f32
      %24 = vector.broadcast %cst_17 : f32 to vector<8x128xf32>
      %c0_18 = arith.constant 0 : index
      %c0_19 = arith.constant 0 : index
      %c0_20 = arith.constant 0 : index
      %25 = vector.load %arg4[%c0_18, %c0_19, %c0_20] : memref<1x8x128xf32, #tpu.memory_space<vmem>>, vector<1x8x128xf32>
      %26 = vector.shape_cast %25 : vector<1x8x128xf32> to vector<8x128xf32>
      %27 = vector.shape_cast %24 : vector<8x128xf32> to vector<1x8x128xf32>
      tpu.vector_store %arg4[%c0_18, %c0_19, %c0_20], %27 {strides = array<i32>} : memref<1x8x128xf32, #tpu.memory_space<vmem>>, vector<1x8x128xf32>,
      %cst_21 = arith.constant 0.000000e+00 : f32
      %28 = vector.broadcast %cst_21 : f32 to vector<8x128xf32>
      %c0_22 = arith.constant 0 : index
      %c0_23 = arith.constant 0 : index
      %c0_24 = arith.constant 0 : index
      %29 = vector.load %arg5[%c0_22, %c0_23, %c0_24] : memref<1x8x128xf32, #tpu.memory_space<vmem>>, vector<1x8x128xf32>
      %30 = vector.shape_cast %29 : vector<1x8x128xf32> to vector<8x128xf32>
      %31 = vector.shape_cast %28 : vector<8x128xf32> to vector<1x8x128xf32>
      tpu.vector_store %arg5[%c0_22, %c0_23, %c0_24], %31 {strides = array<i32>} : memref<1x8x128xf32, #tpu.memory_space<vmem>>, vector<1x8x128xf32>,
    } else {
    }
    %c0 = arith.constant 0 : index
    %c0_1 = arith.constant 0 : index
    %3 = vector.load %arg2[%c0, %c0_1] : memref<16x128xf32, #tpu.memory_space<vmem>>, vector<16x128xf32>
    %c0_2 = arith.constant 0 : index
    %c0_3 = arith.constant 0 : index
    %4 = vector.load %arg3[%c0_2, %c0_3] : memref<16x128xf32, #tpu.memory_space<vmem>>, vector<16x128xf32>
    %5 = arith.subf %3, %4 : vector<16x128xf32>
    %6 = arith.mulf %5, %5 : vector<16x128xf32>
    %7 = math.absf %5 : vector<16x128xf32>
    %c0_4 = arith.constant 0 : index
    %c0_5 = arith.constant 0 : index
    %c0_6 = arith.constant 0 : index
    %8 = vector.load %arg4[%c0_4, %c0_5, %c0_6] : memref<1x8x128xf32, #tpu.memory_space<vmem>>, vector<1x8x128xf32>
    %9 = vector.shape_cast %8 : vector<1x8x128xf32> to vector<8x128xf32>
    %10 = vector.shape_cast %6 : vector<16x128xf32> to vector<2x8x128xf32>
    %cst = arith.constant dense<0.000000e+00> : vector<8x128xf32>
    %11 = vector.multi_reduction <add>, %10, %cst [0] : vector<2x8x128xf32> to vector<8x128xf32>
    %12 = arith.addf %9, %11 : vector<8x128xf32>
    %c0_7 = arith.constant 0 : index
    %c0_8 = arith.constant 0 : index
    %c0_9 = arith.constant 0 : index
    %13 = vector.load %arg4[%c0_7, %c0_8, %c0_9] : memref<1x8x128xf32, #tpu.memory_space<vmem>>, vector<1x8x128xf32>
    %14 = vector.shape_cast %13 : vector<1x8x128xf32> to vector<8x128xf32>
    %15 = vector.shape_cast %12 : vector<8x128xf32> to vector<1x8x128xf32>
    tpu.vector_store %arg4[%c0_7, %c0_8, %c0_9], %15 {strides = array<i32>} : memref<1x8x128xf32, #tpu.memory_space<vmem>>, vector<1x8x128xf32>,
    %c0_10 = arith.constant 0 : index
    %c0_11 = arith.constant 0 : index
    %c0_12 = arith.constant 0 : index
    %16 = vector.load %arg5[%c0_10, %c0_11, %c0_12] : memref<1x8x128xf32, #tpu.memory_space<vmem>>, vector<1x8x128xf32>
    %17 = vector.shape_cast %16 : vector<1x8x128xf32> to vector<8x128xf32>
    %18 = vector.shape_cast %7 : vector<16x128xf32> to vector<2x8x128xf32>
    %cst_13 = arith.constant dense<0.000000e+00> : vector<8x128xf32>
    %19 = vector.multi_reduction <add>, %18, %cst_13 [0] : vector<2x8x128xf32> to vector<8x128xf32>
    %20 = arith.addf %17, %19 : vector<8x128xf32>
    %c0_14 = arith.constant 0 : index
    %c0_15 = arith.constant 0 : index
    %c0_16 = arith.constant 0 : index
    %21 = vector.load %arg5[%c0_14, %c0_15, %c0_16] : memref<1x8x128xf32, #tpu.memory_space<vmem>>, vector<1x8x128xf32>
    %22 = vector.shape_cast %21 : vector<1x8x128xf32> to vector<8x128xf32>
    %23 = vector.shape_cast %20 : vector<8x128xf32> to vector<1x8x128xf32>
    tpu.vector_store %arg5[%c0_14, %c0_15, %c0_16], %23 {strides = array<i32>} : memref<1x8x128xf32, #tpu.memory_space<vmem>>, vector<1x8x128xf32>,
    return
  }
  func.func @transform_0(%arg0: i32, %arg1: i32) -> (i32, i32) {
    %c1_i32 = arith.constant 1 : i32
    %0 = arith.muli %arg0, %c1_i32 : i32
    %1 = arith.addi %0, %arg1 : i32
    %c0_i32 = arith.constant 0 : i32
    %2 = arith.minsi %1, %c0_i32 : i32
    %c0_i32_0 = arith.constant 0 : i32
    %c0_i32_1 = arith.constant 0 : i32
    return %2, %c0_i32_0 : i32, i32
  }
  func.func @transform_1(%arg0: i32, %arg1: i32) -> (i32, i32) {
    %c1_i32 = arith.constant 1 : i32
    %0 = arith.muli %arg0, %c1_i32 : i32
    %1 = arith.addi %0, %arg1 : i32
    %c0_i32 = arith.constant 0 : i32
    %2 = arith.minsi %1, %c0_i32 : i32
    %c0_i32_0 = arith.constant 0 : i32
    %c0_i32_1 = arith.constant 0 : i32
    return %2, %c0_i32_0 : i32, i32
  }
  func.func @transform_2(%arg0: i32, %arg1: i32) -> (i32, i32, i32) {
    %c0_i32 = arith.constant 0 : i32
    %c0_i32_0 = arith.constant 0 : i32
    %c0_i32_1 = arith.constant 0 : i32
    return %arg0, %c0_i32, %c0_i32_0 : i32, i32, i32
  }
  func.func @transform_3(%arg0: i32, %arg1: i32) -> (i32, i32, i32) {
    %c0_i32 = arith.constant 0 : i32
    %c0_i32_0 = arith.constant 0 : i32
    %c0_i32_1 = arith.constant 0 : i32
    return %arg0, %c0_i32, %c0_i32_0 : i32, i32, i32
  }
}

</mosaic_0001>

<llo_original>
// kernel: tpu_custom_call.1
$region0: #{tpu_custom_call.1}
  #allocation0 [shape = 'u32[]', space=smem, size = 0x4, offset = 0x4, fixed_abs, tag = 'smem constant byte address 0x4 - core index']
  #allocation1 [shape = 'u32[144,128]{1,0:T(1,128)}', space=vmem, size = 0x12000, scoped, tag = 'internal scratch']
  %s0 = inlined_call_operand.hbm [shape: f32[16,128], index: 0, kind: input, shape index: {}]
  %s1 = inlined_call_operand.hbm [shape: f32[16,128], index: 1, kind: input, shape index: {}]
  %s2 = inlined_call_operand.hbm [shape: f32[1,8,128], index: 2, kind: output, shape index: {0}]
  %s3 = inlined_call_operand.hbm [shape: f32[1,8,128], index: 3, kind: output, shape index: {1}]
  %4 = xla_tuple %s2, %s3
  %s5 = sld [smem:[#allocation0]]
  $region38: #{tpu_custom_call.1} parent=0
    _
  %s7 = ssub.s32 1, %s5
  %s8 = scalar_select 0, %s7, %s5
  $region1: #{tpu_custom_call.1} parent=0
    #allocation2 [shape = 'u8[8192]{0}', space=vmem, size = 0x2000, scoped, tag = 'input window, operand 0, single buffered']
    #allocation3 [shape = 's32[1]{0}', space=sflag, size = 0x4, scoped, tag = 'scoped memory for tpu_custom_call.1']
    #allocation4 [shape = 's32[1]{0}', space=sflag, size = 0x4, scoped, tag = 'scoped memory for tpu_custom_call.1']
    #allocation5 [shape = 'u8[8192]{0}', space=vmem, size = 0x2000, scoped, tag = 'input window, operand 1, single buffered']
    #allocation6 [shape = 's32[1]{0}', space=sflag, size = 0x4, scoped, tag = 'scoped memory for tpu_custom_call.1']
    #allocation7 [shape = 'u8[4096]{0}', space=vmem, size = 0x1000, scoped, tag = 'output window, operand 0, single buffered']
    #allocation8 [shape = 'u8[4096]{0}', space=vmem, size = 0x1000, scoped, tag = 'output window, operand 1, single buffered']
    #allocation9 [shape = 's32[1]{0}', space=sflag, size = 0x4, scoped, tag = 'scoped memory for tpu_custom_call.1']
    %9 = vsyncpa [#allocation3], 0
    %10 = vsyncpa [#allocation6], 0
    %11 = vsyncpa [#allocation4], 0
    %12 = vsyncpa [#allocation9], 0
    // Predicated region
    $region2: #{tpu_custom_call.1} parent=1 // pred_check
      _
    $region3: #{tpu_custom_call.1} parent=1 // pred_check_branch
      %14 = sbr.rel (0) target = $region5
    $region4: #{tpu_custom_call.1} parent=1 // pred_region
      %s15 = sadd.s32 0, 0
      %p16 = scmp.lt.s32.totalorder %s15, 0
      %s17 = scalar_select %p16, %s15, 0
      %s18 = smul.u32 2, %s17
      %s20 = ssub.s32 256, 256
      %21 = vsyncadd [#allocation3], %s20
      %s22 = smul.addr %s18, 128
      %s23 = scalar_lea.hbm %s0, %s22
      %s24 = sshll.u32 [#allocation2], 4
      %s25 = int_to_ptr.vmem [resolvable:$true] %s24
      %30 = dma.hbm_to_vmem [thread:$0]  %s23, 256, %s25, [#allocation3], 128, 128, 8
    $region5: #{tpu_custom_call.1} parent=1 // pred_fallthru
      _
    // Predicated region
    $region6: #{tpu_custom_call.1} parent=1 // pred_check
      _
    $region7: #{tpu_custom_call.1} parent=1 // pred_check_branch
      %32 = sbr.rel (0) target = $region9
    $region8: #{tpu_custom_call.1} parent=1 // pred_region
      %s33 = sadd.s32 0, 0
      %p34 = scmp.lt.s32.totalorder %s33, 0
      %s35 = scalar_select %p34, %s33, 0
      %s36 = smul.u32 2, %s35
      %s38 = ssub.s32 256, 256
      %39 = vsyncadd [#allocation6], %s38
      %s40 = smul.addr %s36, 128
      %s41 = scalar_lea.hbm %s1, %s40
      %s42 = sshll.u32 [#allocation5], 4
      %s43 = int_to_ptr.vmem [resolvable:$true] %s42
      %48 = dma.hbm_to_vmem [thread:$0]  %s41, 256, %s43, [#allocation6], 128, 128, 8
    $region9: #{tpu_custom_call.1} parent=1 // pred_fallthru
      _
    // Predicated region
    $region10: #{tpu_custom_call.1} parent=1 // pred_check
      _
    $region11: #{tpu_custom_call.1} parent=1 // pred_check_branch
      %50 = sbr.rel (0) target = $region13
    $region12: #{tpu_custom_call.1} parent=1 // pred_region
      %51 = dma.done [#allocation3], 256
    $region13: #{tpu_custom_call.1} parent=1 // pred_fallthru
      _
    // Predicated region
    $region14: #{tpu_custom_call.1} parent=1 // pred_check
      _
    $region15: #{tpu_custom_call.1} parent=1 // pred_check_branch
      %53 = sbr.rel (0) target = $region17
    $region16: #{tpu_custom_call.1} parent=1 // pred_region
      %54 = dma.done [#allocation6], 256
    $region17: #{tpu_custom_call.1} parent=1 // pred_fallthru
      _
    %s55 = sadd.s32 0, 0
    %p56 = scmp.lt.s32.totalorder %s55, 0
    %s57 = scalar_select %p56, %s55, 0
    %s58 = smul.u32 2, %s57
    %s59 = sadd.s32 0, 0
    %p60 = scmp.lt.s32.totalorder %s59, 0
    %s61 = scalar_select %p60, %s59, 0
    %s62 = smul.u32 2, %s61
    %p63 = scmp.eq.s32.totalorder 0, 0
    // Predicated region
    $region18: #{tpu_custom_call.1} parent=1 // pred_check
      %p64 = pneg %p63
    $region19: #{tpu_custom_call.1} parent=1 // pred_check_branch
      %66 = sbr.rel (%p64) target = $region21
    $region20: #{tpu_custom_call.1} parent=1 // pred_region
      %67 = vst [vmem:[#allocation7] sm:$0xff] 0.0
      %68 = vst [vmem:[#allocation8] sm:$0xff] 0.0
    $region21: #{tpu_custom_call.1} parent=1 // pred_fallthru
      _
    %v69 = vld [vmem:[#allocation2] sm:$0xff]
    %v70 = vld [vmem:[#allocation2 + $0x8] sm:$0xff]
    %v71 = vld [vmem:[#allocation5] sm:$0xff]
    %v72 = vld [vmem:[#allocation5 + $0x8] sm:$0xff]
    %v73 = vsub.f32 %v69, %v71
    %v74 = vsub.f32 %v70, %v72
    %v75 = vmul.f32 %v73, %v73
    %v76 = vmul.f32 %v74, %v74
    %v77 = vand.u32 2147483647, %v73
    %v78 = vand.u32 2147483647, %v74
    %v79 = vld [vmem:[#allocation7] sm:$0xff]
    %v80 = vadd.f32 %v75, %v76
    %v81 = vadd.f32 %v79, %v80
    %82 = vst [vmem:[#allocation7] sm:$0xff] %v81
    %v83 = vld [vmem:[#allocation8] sm:$0xff]
    %v84 = vadd.f32 %v77, %v78
    %v85 = vadd.f32 %v83, %v84
    %86 = vst [vmem:[#allocation8] sm:$0xff] %v85
    // Predicated region
    $region22: #{tpu_custom_call.1} parent=1 // pred_check
      _
    $region23: #{tpu_custom_call.1} parent=1 // pred_check_branch
      %88 = sbr.rel (0) target = $region25
    $region24: #{tpu_custom_call.1} parent=1 // pred_region
      %s90 = ssub.s32 128, 128
      %91 = vsyncadd [#allocation4], %s90
      %s93 = sshll.u32 [#allocation7], 4
      %s94 = int_to_ptr.vmem [resolvable:$true] %s93
      %96 = dma.vmem_to_hbm [thread:$0]  %s94, 128, %s2, [#allocation4]
    $region25: #{tpu_custom_call.1} parent=1 // pred_fallthru
      _
    // Predicated region
    $region26: #{tpu_custom_call.1} parent=1 // pred_check
      _
    $region27: #{tpu_custom_call.1} parent=1 // pred_check_branch
      %98 = sbr.rel (0) target = $region29
    $region28: #{tpu_custom_call.1} parent=1 // pred_region
      %s100 = ssub.s32 128, 128
      %101 = vsyncadd [#allocation9], %s100
      %s103 = sshll.u32 [#allocation8], 4
      %s104 = int_to_ptr.vmem [resolvable:$true] %s103
      %106 = dma.vmem_to_hbm [thread:$0]  %s104, 128, %s3, [#allocation9]
    $region29: #{tpu_custom_call.1} parent=1 // pred_fallthru
      _
    // Predicated region
    $region30: #{tpu_custom_call.1} parent=1 // pred_check
      _
    $region31: #{tpu_custom_call.1} parent=1 // pred_check_branch
      %108 = sbr.rel (0) target = $region33
    $region32: #{tpu_custom_call.1} parent=1 // pred_region
      %109 = dma.done [#allocation4], 128
    $region33: #{tpu_custom_call.1} parent=1 // pred_fallthru
      _
    // Predicated region
    $region34: #{tpu_custom_call.1} parent=1 // pred_check
      _
    $region35: #{tpu_custom_call.1} parent=1 // pred_check_branch
      %111 = sbr.rel (0) target = $region37
    $region36: #{tpu_custom_call.1} parent=1 // pred_region
      %112 = dma.done [#allocation9], 128
    $region37: #{tpu_custom_call.1} parent=1 // pred_fallthru
      _
    %113 = vsyncpa [#allocation3], 1
    %114 = vsyncpa [#allocation6], 1
    %115 = vsyncpa [#allocation4], 1
    %116 = vsyncpa [#allocation9], 1

</llo_original>
